<compile_context>
chip_gen: v6e
topology: v6e:2x2x1
jax: 0.10.0
libtpu: 0.0.40
codegen_flags: <defaults>
</compile_context>

<pallas_src>
import math
from functools import partial

import jax
import jax.numpy as jnp
from jax.experimental import pallas as pl
from jax.experimental.pallas import tpu as pltpu


# ----------------------------- config ---------------------------------------
BATCH = 2
SEQ = 8
HIDDEN = 32
NUM_HEADS = 4
HEAD_DIM = HIDDEN // NUM_HEADS
LN_EPS = 1e-12  # BERT config.layer_norm_eps default


# ----------------------------- kernel ---------------------------------------
def bert_attention_kernel(
    x_ref,       # (S, D)       f32   hidden_states rows for this batch element
    mask_ref,    # (1, 1, S)    f32   additive attention mask for this batch element
    wqkv_ref,    # (1, D, 3*Dh) bf16  fused per-head QKV weight (pre-transposed)
    bqkv_ref,    # (1, 1, 3*Dh) f32   fused per-head QKV bias
    wo_ref,      # (1, Dh, D)   bf16  per-head rows of Wo^T
    bo_ref,      # (1, D)       f32   output-dense bias
    gamma_ref,   # (1, D)       f32   LayerNorm weight
    beta_ref,    # (1, D)       f32   LayerNorm bias
    out_ref,     # (S, D)       f32
    acc_ref,     # (S, D)       f32   scratch: output-projection accumulator over heads
):
    h = pl.program_id(1)
    num_heads = pl.num_programs(1)

    Dh = wo_ref.shape[1]
    scale = 1.0 / math.sqrt(Dh)

    x = x_ref[...]                       # f32 (kept for residual / LayerNorm)
    xb = x.astype(jnp.bfloat16)

    # --- fused per-head Q/K/V projection: ONE MXU matmul, then lane-slice ---
    qkv = jnp.dot(xb, wqkv_ref[0], preferred_element_type=jnp.float32) + bqkv_ref[0]
    q = (qkv[:, :Dh] * scale).astype(jnp.bfloat16)       # (S, Dh)
    k = qkv[:, Dh:2 * Dh].astype(jnp.bfloat16)           # (S, Dh)
    v = qkv[:, 2 * Dh:].astype(jnp.bfloat16)             # (S, Dh)

    # --- scaled dot-product attention for this (batch, head) only ---
    scores = jnp.einsum("qd,kd->qk", q, k,
                        preferred_element_type=jnp.float32)        # (S, S)
    scores = scores + mask_ref[0]                                  # (1, S) broadcast

    m = jnp.max(scores, axis=-1, keepdims=True)
    p = jnp.exp(scores - m)
    denom = jnp.sum(p, axis=-1, keepdims=True)
    probs = p / denom            # exact reciprocal (EUP is not the bottleneck)
    # attention-probs dropout is identity in eval mode

    ctx = jnp.dot(probs.astype(jnp.bfloat16), v,
                  preferred_element_type=jnp.float32)              # (S, Dh)

    # --- this head's contribution to BertSelfOutput.dense, accumulated over heads ---
    partial_out = jnp.dot(ctx.astype(jnp.bfloat16), wo_ref[0],
                          preferred_element_type=jnp.float32)      # (S, D)

    @pl.when(h == 0)
    def _():
        acc_ref[...] = jnp.zeros_like(acc_ref)

    acc_ref[...] += partial_out

    # --- finalize on the last head: bias -> residual -> LayerNorm (all f32) ---
    @pl.when(h == num_heads - 1)
    def _():
        res = acc_ref[...] + bo_ref[...] + x
        mean = jnp.mean(res, axis=-1, keepdims=True)
        centered = res - mean
        var = jnp.mean(centered * centered, axis=-1, keepdims=True)
        inv_std = jax.lax.rsqrt(var + LN_EPS)
        y = centered * inv_std * gamma_ref[...] + beta_ref[...]
        out_ref[...] = y.astype(out_ref.dtype)


# ----------------------------- param prep (called ONCE, outside the hot path) --
def prepare_params(params, num_heads):
    """Pre-transpose / pack / cast weights once at load time."""
    D = params["wq"].shape[0]
    H = num_heads
    Dh = D // H
    bf16 = jnp.bfloat16

    def head_cols(w):
        # nn.Linear weight (D_out, D_in): y = x @ w.T.  Split the OUTPUT features
        # (columns of w.T) into heads -> (H, D_in, Dh).
        return w.T.reshape(D, H, Dh).transpose(1, 0, 2)

    wqkv_heads = jnp.concatenate(
        [head_cols(params["wq"]), head_cols(params["wk"]), head_cols(params["wv"])],
        axis=-1,
    ).astype(bf16)                                       # (H, D, 3*Dh)

    bqkv_heads = jnp.concatenate(
        [params["bq"].reshape(H, 1, Dh),
         params["bk"].reshape(H, 1, Dh),
         params["bv"].reshape(H, 1, Dh)],
        axis=-1,
    ).astype(jnp.float32)                                # (H, 1, 3*Dh)

    # BertSelfOutput.dense: out = ctx @ wo.T.  Split the INPUT features (rows of
    # wo.T) into heads so the projection can be accumulated head-by-head.
    wo_t_heads = params["wo"].T.reshape(H, Dh, D).astype(bf16)   # (H, Dh, D)

    return dict(
        wqkv=wqkv_heads, bqkv=bqkv_heads, wo=wo_t_heads,
        bo=params["bo"], gamma=params["gamma"], beta=params["beta"],
    )


# ----------------------------- wrapper ---------------------------------------
@jax.jit
def bert_attention(x, attn_mask, prep):
    """x: (B, S, D) float32, attn_mask: (B, S) additive float32 mask,
    prep: output of prepare_params()."""
    B, S, D = x.shape
    H = prep["wqkv"].shape[0]
    Dh3 = prep["wqkv"].shape[2]
    Dh = Dh3 // 3

    x2d = x.reshape(B * S, D)            # flattened, lane-friendly activation slab
    mask3 = attn_mask[:, None, :]        # (B, 1, S)

    out2d = pl.pallas_call(
        bert_attention_kernel,
        out_shape=jax.ShapeDtypeStruct((B * S, D), x.dtype),
        grid_spec=pltpu.PrefetchScalarGridSpec(
            num_scalar_prefetch=0,
            grid=(B, H),                                     # batch parallel, head reduction
            in_specs=[
                pl.BlockSpec((S, D), lambda b, h: (b, 0)),           # x rows (resident across h)
                pl.BlockSpec((1, 1, S), lambda b, h: (b, 0, 0)),     # additive mask
                pl.BlockSpec((1, D, Dh3), lambda b, h: (h, 0, 0)),   # fused Wqkv (per head)
                pl.BlockSpec((1, 1, Dh3), lambda b, h: (h, 0, 0)),   # fused bqkv (per head)
                pl.BlockSpec((1, Dh, D), lambda b, h: (h, 0, 0)),    # Wo^T rows (per head)
                pl.BlockSpec((1, D), lambda b, h: (0, 0)),           # bo
                pl.BlockSpec((1, D), lambda b, h: (0, 0)),           # gamma
                pl.BlockSpec((1, D), lambda b, h: (0, 0)),           # beta
            ],
            out_specs=pl.BlockSpec((S, D), lambda b, h: (b, 0)),     # resident across h
            scratch_shapes=[pltpu.VMEM((S, D), jnp.float32)],        # head-sum accumulator
        ),
        compiler_params=pltpu.CompilerParams(
            dimension_semantics=("parallel", "arbitrary"),
            vmem_limit_bytes=32 * 1024 * 1024,
        ),
    )(
        x2d, mask3,
        prep["wqkv"], prep["bqkv"], prep["wo"],
        prep["bo"], prep["gamma"], prep["beta"],
    )
    return out2d.reshape(B, S, D)


# ----------------------------- reference -------------------------------------
def bert_attention_ref(x, attn_mask, params):
    B, S, D = x.shape
    q = x @ params["wq"].T + params["bq"]
    k = x @ params["wk"].T + params["bk"]
    v = x @ params["wv"].T + params["bv"]

    def split(t):  # (B,S,D) -> (B,H,S,Dh)
        return t.reshape(B, S, NUM_HEADS, HEAD_DIM).transpose(0, 2, 1, 3)

    qh, kh, vh = split(q), split(k), split(v)
    scores = jnp.einsum("bhqd,bhkd->bhqk", qh, kh) / math.sqrt(HEAD_DIM)
    scores = scores + attn_mask[:, None, None, :]
    probs = jax.nn.softmax(scores, axis=-1)
    ctx = jnp.einsum("bhqk,bhkd->bhqd", probs, vh)
    ctx = ctx.transpose(0, 2, 1, 3).reshape(B, S, D)

    proj = ctx @ params["wo"].T + params["bo"]
    res = proj + x
    mean = res.mean(-1, keepdims=True)
    var = ((res - mean) ** 2).mean(-1, keepdims=True)
    return (res - mean) / jnp.sqrt(var + LN_EPS) * params["gamma"] + params["beta"]


# ----------------------------- main -------------------------------------------
if __name__ == "__main__":
    key = jax.random.PRNGKey(0)
    keys = jax.random.split(key, 10)

    def init_linear(kw, kb, out_dim, in_dim):
        w = jax.random.normal(kw, (out_dim, in_dim), jnp.float32) * 0.02
        b = jax.random.normal(kb, (1, out_dim), jnp.float32) * 0.02
        return w, b

    wq, bq = init_linear(keys[0], keys[1], HIDDEN, HIDDEN)
    wk, bk = init_linear(keys[2], keys[3], HIDDEN, HIDDEN)
    wv, bv = init_linear(keys[4], keys[5], HIDDEN, HIDDEN)
    wo, bo = init_linear(keys[6], keys[7], HIDDEN, HIDDEN)

    params = dict(
        wq=wq, bq=bq, wk=wk, bk=bk, wv=wv, bv=bv, wo=wo, bo=bo,
        gamma=jnp.ones((1, HIDDEN), jnp.float32),   # LayerNorm default init
        beta=jnp.zeros((1, HIDDEN), jnp.float32),
    )

    # One-time weight packing (hoisted out of the per-call hot path).
    prep = prepare_params(params, NUM_HEADS)

    x = jax.random.normal(keys[8], (BATCH, SEQ, HIDDEN), jnp.float32)
    # Additive attention mask: last 2 tokens of batch element 1 masked out.
    pad = jnp.zeros((BATCH, SEQ), jnp.float32)
    pad = pad.at[1, -2:].set(-10000.0)

    out = bert_attention(x, pad, prep)
    out = jax.block_until_ready(out)

    ref = bert_attention_ref(x, pad, params)
    assert out.shape == (BATCH, SEQ, HIDDEN)
    # bf16 matmul operands (f32 accumulation) -> slightly looser tolerance.
    assert jnp.allclose(out, ref, atol=1e-2, rtol=1e-2), float(jnp.abs(out - ref).max())

    print("KERNEL_OK")
</pallas_src>

<mosaic_0001>
module attributes {stable_mosaic.version = 11 : i64} {
  func.func @bert_attention_kernel(%arg0: i32, %arg1: i32, %arg2: memref<8x32xf32, #tpu.memory_space<vmem>>, %arg3: memref<1x1x8xf32, #tpu.memory_space<vmem>>, %arg4: memref<1x32x24xbf16, #tpu.memory_space<vmem>>, %arg5: memref<1x1x24xf32, #tpu.memory_space<vmem>>, %arg6: memref<1x8x32xbf16, #tpu.memory_space<vmem>>, %arg7: memref<1x32xf32, #tpu.memory_space<vmem>>, %arg8: memref<1x32xf32, #tpu.memory_space<vmem>>, %arg9: memref<1x32xf32, #tpu.memory_space<vmem>>, %arg10: memref<8x32xf32, #tpu.memory_space<vmem>>, %arg11: memref<8x32xf32, #tpu.memory_space<vmem>>) attributes {dimension_semantics = [#tpu.dimension_semantics<parallel>, #tpu.dimension_semantics<arbitrary>], iteration_bounds = array<i64: 2, 4>, scalar_prefetch = 0 : i64, scratch_operands = 1 : i64, tpu.core_type = #tpu.core_type<tc>, window_params = [{transform_indices = @transform_0, window_bounds = array<i64: 8, 32>}, {transform_indices = @transform_1, window_bounds = array<i64: 1, 1, 8>}, {transform_indices = @transform_2, window_bounds = array<i64: 1, 32, 24>}, {transform_indices = @transform_3, window_bounds = array<i64: 1, 1, 24>}, {transform_indices = @transform_4, window_bounds = array<i64: 1, 8, 32>}, {pipeline_mode = #tpu.pipeline_mode<synchronous>, transform_indices = @transform_5, window_bounds = array<i64: 1, 32>}, {pipeline_mode = #tpu.pipeline_mode<synchronous>, transform_indices = @transform_6, window_bounds = array<i64: 1, 32>}, {pipeline_mode = #tpu.pipeline_mode<synchronous>, transform_indices = @transform_7, window_bounds = array<i64: 1, 32>}, {transform_indices = @transform_8, window_bounds = array<i64: 8, 32>}]} {
    %c0 = arith.constant 0 : index
    %c0_0 = arith.constant 0 : index
    %0 = vector.load %arg2[%c0, %c0_0] : memref<8x32xf32, #tpu.memory_space<vmem>>, vector<8x32xf32>
    %1 = arith.truncf %0 : vector<8x32xf32> to vector<8x32xbf16>
    %c0_1 = arith.constant 0 : index
    %c0_2 = arith.constant 0 : index
    %c0_3 = arith.constant 0 : index
    %2 = vector.load %arg4[%c0_1, %c0_2, %c0_3] : memref<1x32x24xbf16, #tpu.memory_space<vmem>>, vector<1x32x24xbf16>
    %3 = vector.shape_cast %2 : vector<1x32x24xbf16> to vector<32x24xbf16>
    %cst = arith.constant dense<0.000000e+00> : vector<8x24xf32>
    %4 = tpu.matmul %1, %3, %cst {dimension_numbers = #tpu.dot_dimension_numbers<[1], [0], [0], [1], [0, 0, 1, 1], [], []>} : vector<8x32xbf16>, vector<32x24xbf16>, vector<8x24xf32> -> vector<8x24xf32>
    %c0_4 = arith.constant 0 : index
    %c0_5 = arith.constant 0 : index
    %c0_6 = arith.constant 0 : index
    %5 = vector.load %arg5[%c0_4, %c0_5, %c0_6] : memref<1x1x24xf32, #tpu.memory_space<vmem>>, vector<1x1x24xf32>
    %6 = vector.shape_cast %5 : vector<1x1x24xf32> to vector<1x24xf32>
    %7 = vector.broadcast %6 : vector<1x24xf32> to vector<8x24xf32>
    %8 = arith.addf %4, %7 : vector<8x24xf32>
    %9 = vector.extract_strided_slice %8 {offsets = [0, 0], sizes = [8, 8], strides = [1, 1]} : vector<8x24xf32> to vector<8x8xf32>
    %cst_7 = arith.constant 0.353553385 : f32
    %10 = vector.broadcast %cst_7 : f32 to vector<8x8xf32>
    %11 = arith.mulf %9, %10 : vector<8x8xf32>
    %12 = arith.truncf %11 : vector<8x8xf32> to vector<8x8xbf16>
    %13 = vector.extract_strided_slice %8 {offsets = [0, 8], sizes = [8, 8], strides = [1, 1]} : vector<8x24xf32> to vector<8x8xf32>
    %14 = arith.truncf %13 : vector<8x8xf32> to vector<8x8xbf16>
    %15 = vector.extract_strided_slice %8 {offsets = [0, 16], sizes = [8, 8], strides = [1, 1]} : vector<8x24xf32> to vector<8x8xf32>
    %16 = arith.truncf %15 : vector<8x8xf32> to vector<8x8xbf16>
    "tpu.trace_start"() <{level = 10 : i32, message = "qd,kd->qk"}> : () -> ()
    %cst_8 = arith.constant dense<0.000000e+00> : vector<8x8xf32>
    %17 = tpu.matmul %12, %14, %cst_8 {dimension_numbers = #tpu.dot_dimension_numbers<[1], [1], [0], [0], [0, 0, 1, 0], [], []>} : vector<8x8xbf16>, vector<8x8xbf16>, vector<8x8xf32> -> vector<8x8xf32>
    "tpu.trace_stop"() : () -> ()
    %c0_9 = arith.constant 0 : index
    %c0_10 = arith.constant 0 : index
    %c0_11 = arith.constant 0 : index
    %18 = vector.load %arg3[%c0_9, %c0_10, %c0_11] : memref<1x1x8xf32, #tpu.memory_space<vmem>>, vector<1x1x8xf32>
    %19 = vector.shape_cast %18 : vector<1x1x8xf32> to vector<1x8xf32>
    %20 = vector.broadcast %19 : vector<1x8xf32> to vector<8x8xf32>
    %21 = arith.addf %17, %20 : vector<8x8xf32>
    %cst_12 = arith.constant dense<0xFF800000> : vector<8xf32>
    %22 = vector.multi_reduction <maximumf>, %21, %cst_12 [1] : vector<8x8xf32> to vector<8xf32>
    %23 = vector.shape_cast %22 : vector<8xf32> to vector<8x1xf32>
    %24 = vector.broadcast %23 : vector<8x1xf32> to vector<8x8xf32>
    %25 = arith.subf %21, %24 : vector<8x8xf32>
    %26 = math.exp %25 : vector<8x8xf32>
    %cst_13 = arith.constant dense<0.000000e+00> : vector<8xf32>
    %27 = vector.multi_reduction <add>, %26, %cst_13 [1] : vector<8x8xf32> to vector<8xf32>
    %28 = vector.shape_cast %27 : vector<8xf32> to vector<8x1xf32>
    %29 = vector.broadcast %28 : vector<8x1xf32> to vector<8x8xf32>
    %30 = arith.divf %26, %29 : vector<8x8xf32>
    %31 = arith.truncf %30 : vector<8x8xf32> to vector<8x8xbf16>
    %cst_14 = arith.constant dense<0.000000e+00> : vector<8x8xf32>
    %32 = tpu.matmul %31, %16, %cst_14 {dimension_numbers = #tpu.dot_dimension_numbers<[1], [0], [0], [1], [0, 0, 1, 1], [], []>} : vector<8x8xbf16>, vector<8x8xbf16>, vector<8x8xf32> -> vector<8x8xf32>
    %33 = arith.truncf %32 : vector<8x8xf32> to vector<8x8xbf16>
    %c0_15 = arith.constant 0 : index
    %c0_16 = arith.constant 0 : index
    %c0_17 = arith.constant 0 : index
    %34 = vector.load %arg6[%c0_15, %c0_16, %c0_17] : memref<1x8x32xbf16, #tpu.memory_space<vmem>>, vector<1x8x32xbf16>
    %35 = vector.shape_cast %34 : vector<1x8x32xbf16> to vector<8x32xbf16>
    %cst_18 = arith.constant dense<0.000000e+00> : vector<8x32xf32>
    %36 = tpu.matmul %33, %35, %cst_18 {dimension_numbers = #tpu.dot_dimension_numbers<[1], [0], [0], [1], [0, 0, 1, 1], [], []>} : vector<8x8xbf16>, vector<8x32xbf16>, vector<8x32xf32> -> vector<8x32xf32>
    %c0_i32 = arith.constant 0 : i32
    %37 = arith.cmpi eq, %arg1, %c0_i32 : i32
    %38 = arith.extui %37 : i1 to i32
    %c0_i32_19 = arith.constant 0 : i32
    %39 = arith.cmpi ne, %38, %c0_i32_19 : i32
    scf.if %39 {
      %cst_25 = arith.constant 0.000000e+00 : f32
      %46 = vector.broadcast %cst_25 : f32 to vector<8x32xf32>
      %c0_26 = arith.constant 0 : index
      %c0_27 = arith.constant 0 : index
      %47 = vector.load %arg11[%c0_26, %c0_27] : memref<8x32xf32, #tpu.memory_space<vmem>>, vector<8x32xf32>
      tpu.vector_store %arg11[%c0_26, %c0_27], %46 {strides = array<i32>} : memref<8x32xf32, #tpu.memory_space<vmem>>, vector<8x32xf32>,
    } else {
    }
    %c0_20 = arith.constant 0 : index
    %c0_21 = arith.constant 0 : index
    %40 = vector.load %arg11[%c0_20, %c0_21] : memref<8x32xf32, #tpu.memory_space<vmem>>, vector<8x32xf32>
    %41 = arith.addf %40, %36 : vector<8x32xf32>
    %c0_22 = arith.constant 0 : index
    %c0_23 = arith.constant 0 : index
    %42 = vector.load %arg11[%c0_22, %c0_23] : memref<8x32xf32, #tpu.memory_space<vmem>>, vector<8x32xf32>
    tpu.vector_store %arg11[%c0_22, %c0_23], %41 {strides = array<i32>} : memref<8x32xf32, #tpu.memory_space<vmem>>, vector<8x32xf32>,
    %c3_i32 = arith.constant 3 : i32
    %43 = arith.cmpi eq, %arg1, %c3_i32 : i32
    %44 = arith.extui %43 : i1 to i32
    %c0_i32_24 = arith.constant 0 : i32
    %45 = arith.cmpi ne, %44, %c0_i32_24 : i32
    scf.if %45 {
      %c0_25 = arith.constant 0 : index
      %c0_26 = arith.constant 0 : index
      %46 = vector.load %arg11[%c0_25, %c0_26] : memref<8x32xf32, #tpu.memory_space<vmem>>, vector<8x32xf32>
      %c0_27 = arith.constant 0 : index
      %c0_28 = arith.constant 0 : index
      %47 = vector.load %arg7[%c0_27, %c0_28] : memref<1x32xf32, #tpu.memory_space<vmem>>, vector<1x32xf32>
      %48 = vector.broadcast %47 : vector<1x32xf32> to vector<8x32xf32>
      %49 = arith.addf %46, %48 : vector<8x32xf32>
      %50 = arith.addf %49, %0 : vector<8x32xf32>
      %cst_29 = arith.constant dense<0.000000e+00> : vector<8xf32>
      %51 = vector.multi_reduction <add>, %50, %cst_29 [1] : vector<8x32xf32> to vector<8xf32>
      %52 = vector.shape_cast %51 : vector<8xf32> to vector<8x1xf32>
      %cst_30 = arith.constant 3.200000e+01 : f32
      %53 = vector.broadcast %cst_30 : f32 to vector<8x1xf32>
      %54 = arith.divf %52, %53 : vector<8x1xf32>
      %55 = vector.broadcast %54 : vector<8x1xf32> to vector<8x32xf32>
      %56 = arith.subf %50, %55 : vector<8x32xf32>
      %57 = arith.mulf %56, %56 : vector<8x32xf32>
      %cst_31 = arith.constant dense<0.000000e+00> : vector<8xf32>
      %58 = vector.multi_reduction <add>, %57, %cst_31 [1] : vector<8x32xf32> to vector<8xf32>
      %59 = vector.shape_cast %58 : vector<8xf32> to vector<8x1xf32>
      %cst_32 = arith.constant 3.200000e+01 : f32
      %60 = vector.broadcast %cst_32 : f32 to vector<8x1xf32>
      %61 = arith.divf %59, %60 : vector<8x1xf32>
      %cst_33 = arith.constant 9.99999996E-13 : f32
      %62 = vector.broadcast %cst_33 : f32 to vector<8x1xf32>
      %63 = arith.addf %61, %62 : vector<8x1xf32>
      %64 = math.rsqrt %63 : vector<8x1xf32>
      %65 = vector.broadcast %64 : vector<8x1xf32> to vector<8x32xf32>
      %66 = arith.mulf %56, %65 : vector<8x32xf32>
      %c0_34 = arith.constant 0 : index
      %c0_35 = arith.constant 0 : index
      %67 = vector.load %arg8[%c0_34, %c0_35] : memref<1x32xf32, #tpu.memory_space<vmem>>, vector<1x32xf32>
      %68 = vector.broadcast %67 : vector<1x32xf32> to vector<8x32xf32>
      %69 = arith.mulf %66, %68 : vector<8x32xf32>
      %c0_36 = arith.constant 0 : index
      %c0_37 = arith.constant 0 : index
      %70 = vector.load %arg9[%c0_36, %c0_37] : memref<1x32xf32, #tpu.memory_space<vmem>>, vector<1x32xf32>
      %71 = vector.broadcast %70 : vector<1x32xf32> to vector<8x32xf32>
      %72 = arith.addf %69, %71 : vector<8x32xf32>
      %c0_38 = arith.constant 0 : index
      %c0_39 = arith.constant 0 : index
      %73 = vector.load %arg10[%c0_38, %c0_39] : memref<8x32xf32, #tpu.memory_space<vmem>>, vector<8x32xf32>
      tpu.vector_store %arg10[%c0_38, %c0_39], %72 {strides = array<i32>} : memref<8x32xf32, #tpu.memory_space<vmem>>, vector<8x32xf32>,
    } else {
    }
    return
  }
  func.func @transform_0(%arg0: i32, %arg1: i32) -> (i32, i32) {
    %c0_i32 = arith.constant 0 : i32
    %c0_i32_0 = arith.constant 0 : i32
    return %arg0, %c0_i32 : i32, i32
  }
  func.func @transform_1(%arg0: i32, %arg1: i32) -> (i32, i32, i32) {
    %c0_i32 = arith.constant 0 : i32
    %c0_i32_0 = arith.constant 0 : i32
    %c0_i32_1 = arith.constant 0 : i32
    return %arg0, %c0_i32, %c0_i32_0 : i32, i32, i32
  }
  func.func @transform_2(%arg0: i32, %arg1: i32) -> (i32, i32, i32) {
    %c0_i32 = arith.constant 0 : i32
    %c0_i32_0 = arith.constant 0 : i32
    %c0_i32_1 = arith.constant 0 : i32
    return %arg1, %c0_i32, %c0_i32_0 : i32, i32, i32
  }
  func.func @transform_3(%arg0: i32, %arg1: i32) -> (i32, i32, i32) {
    %c0_i32 = arith.constant 0 : i32
    %c0_i32_0 = arith.constant 0 : i32
    %c0_i32_1 = arith.constant 0 : i32
    return %arg1, %c0_i32, %c0_i32_0 : i32, i32, i32
  }
  func.func @transform_4(%arg0: i32, %arg1: i32) -> (i32, i32, i32) {
    %c0_i32 = arith.constant 0 : i32
    %c0_i32_0 = arith.constant 0 : i32
    %c0_i32_1 = arith.constant 0 : i32
    return %arg1, %c0_i32, %c0_i32_0 : i32, i32, i32
  }
  func.func @transform_5(%arg0: i32, %arg1: i32) -> (i32, i32) {
    %c0_i32 = arith.constant 0 : i32
    %c0_i32_0 = arith.constant 0 : i32
    %c0_i32_1 = arith.constant 0 : i32
    return %c0_i32, %c0_i32_0 : i32, i32
  }
  func.func @transform_6(%arg0: i32, %arg1: i32) -> (i32, i32) {
    %c0_i32 = arith.constant 0 : i32
    %c0_i32_0 = arith.constant 0 : i32
    %c0_i32_1 = arith.constant 0 : i32
    return %c0_i32, %c0_i32_0 : i32, i32
  }
  func.func @transform_7(%arg0: i32, %arg1: i32) -> (i32, i32) {
    %c0_i32 = arith.constant 0 : i32
    %c0_i32_0 = arith.constant 0 : i32
    %c0_i32_1 = arith.constant 0 : i32
    return %c0_i32, %c0_i32_0 : i32, i32
  }
  func.func @transform_8(%arg0: i32, %arg1: i32) -> (i32, i32) {
    %c0_i32 = arith.constant 0 : i32
    %c0_i32_0 = arith.constant 0 : i32
    return %arg0, %c0_i32 : i32, i32
  }
}

</mosaic_0001>

<llo_original>
// kernel: bert_attention.1
$region0: #{bert_attention.1}
  #allocation0 [shape = 'u32[]', space=smem, size = 0x4, offset = 0x4, fixed_abs, tag = 'smem constant byte address 0x4 - core index']
  #allocation1 [shape = 'u32[144,128]{1,0:T(1,128)}', space=vmem, size = 0x12000, scoped, tag = 'internal scratch']
  #allocation2 [shape = 'f32[8,32]{1,0:T(8,128)}', space=vmem, size = 0x1000, scoped, tag = 'scratch operand']
  %s0 = inlined_call_operand.vmem [shape: f32[16,32], index: 0, kind: input, shape index: {}]
  %s1 = inlined_call_operand.vmem [shape: f32[2,1,8], index: 1, kind: input, shape index: {}]
  %s2 = inlined_call_operand.vmem [shape: bf16[4,32,24], index: 2, kind: input, shape index: {}]
  %s3 = inlined_call_operand.vmem [shape: f32[4,1,24], index: 3, kind: input, shape index: {}]
  %s4 = inlined_call_operand.vmem [shape: bf16[4,8,32], index: 4, kind: input, shape index: {}]
  %s5 = inlined_call_operand.vmem [shape: f32[1,32], index: 5, kind: input, shape index: {}]
  %s6 = inlined_call_operand.vmem [shape: f32[1,32], index: 6, kind: input, shape index: {}]
  %s7 = inlined_call_operand.vmem [shape: f32[1,32], index: 7, kind: input, shape index: {}]
  %s8 = inlined_call_operand.hbm [shape: f32[16,32], index: 8, kind: output, shape index: {}]
  %s9 = sld [smem:[#allocation0]]
  $region73: #{bert_attention.1} parent=0
    _
  %s11 = ssub.s32 1, %s9
  %s12 = scalar_select 0, %s11, %s9
  $region1: #{bert_attention.1} parent=0
    #allocation3 [shape = 'u8[8192]{0}', space=vmem, size = 0x2000, scoped, tag = 'output window, operand 0']
    #allocation4 [shape = 's32[2]{0}', space=sflag, size = 0x8, scoped, tag = 'scoped memory for bert_attention.1']
    %13 = vsyncpa [#allocation4], 0
    %s14 = scalar_lea.sflag [#allocation4], 1
    %15 = vsyncpa %s14, 0
    loop: start=0, step=1, limit=10
    $region2: #{bert_attention.1} parent=1 // loop_pre_header
      _
    $region3: #{bert_attention.1} parent=1 // loop_header
      %s17 = sphi 0, %s21
      %p18 = scmp.ge.s32.totalorder %s17, 10
      %s24 = sphi 0, %s36
      %s25 = sphi 0, %s32
      %s26 = sphi 0, %s24
      %s27 = sphi 0, %s25
      %s28 = sphi 0, %s26
      %s29 = sphi 0, %s27
      %s39 = sphi 0, %s41
      %s42 = sphi 0, %s39
      %s43 = sphi 0, %s42
      %s59 = sphi 0, %s43
      %s65 = sphi 0, %s67
      %s68 = sphi 0, %s65
      %s69 = sphi 0, %s68
      %s85 = sphi 0, %s69
      %s91 = sphi 0, %s93
      %s94 = sphi 0, %s91
      %s95 = sphi 0, %s94
      %s111 = sphi 0, %s95
      %s117 = sphi 0, %s119
      %s120 = sphi 0, %s117
      %s121 = sphi 0, %s120
      %s137 = sphi 0, %s121
      %s143 = sphi 0, %s145
      %s146 = sphi 0, %s143
      %s147 = sphi 0, %s146
      %s163 = sphi 0, %s147
      %s167 = sphi 0, %s167
      %s169 = sphi 0, %s167
      %s170 = sphi 0, %s169
      %s184 = sphi 0, %s170
      %s188 = sphi 0, %s188
      %s190 = sphi 0, %s188
      %s191 = sphi 0, %s190
      %s205 = sphi 0, %s191
      %s209 = sphi 0, %s209
      %s211 = sphi 0, %s209
      %s212 = sphi 0, %s211
      %s226 = sphi 0, %s212
      %s232 = sphi 0, %s234
      %s235 = sphi 0, %s232
      %s236 = sphi 0, %s235
      %s252 = sphi 0, %s236
    $region4: #{bert_attention.1} parent=1 // loop_header_branch
      %20 = sbr.rel (%p18) target = $region8
    $region5: #{bert_attention.1} parent=1 // loop_body
      %s22 = ssub.s32 %s17, 1
      %s23 = ssub.s32 %s17, 2
      %s30 = sadd.s32 1, %s25
      %p31 = scmp.ge.s32.totalorder %s30, 4
      %s32 = scalar_select %p31, 0, %s30
      %s33 = sadd.s32 1, %s24
      %s34 = scalar_select %p31, %s33, %s24
      %p35 = scmp.ge.s32.totalorder %s34, 2
      %s36 = scalar_select %p35, 0, %s34
      %s37 = ssub.s32 %s24, %s36
      %p38 = scmp.eq.s32.totalorder %s37, 0
      %s40 = sadd.s32 %s39, 1
      %s41 = scalar_select %p38, %s39, %s40
      %p44 = pneg %p38
      %p45 = scmp.eq.s32.totalorder %s17, 7
      %p46 = por %p44, %p45
      %p47 = scmp.ne.s32.totalorder %s39, %s42
      %p48 = scmp.eq.s32.totalorder %s17, 0
      %p49 = por %p47, %p48
      %p50 = scmp.ne.s32.totalorder %s39, %s42
      %p51 = scmp.eq.s32.totalorder %s22, 7
      %p52 = por %p50, %p51
      %p53 = scmp.ne.s32.totalorder %s42, %s43
      %p54 = scmp.eq.s32.totalorder %s22, 0
      %p55 = por %p53, %p54
      %p56 = scmp.ne.s32.totalorder %s42, %s43
      %p57 = scmp.eq.s32.totalorder %s23, 7
      %p58 = por %p56, %p57
      %p60 = scmp.ne.s32.totalorder %s43, %s59
      %p61 = scmp.eq.s32.totalorder %s23, 0
      %p62 = por %p60, %p61
      %s63 = ssub.s32 %s24, %s36
      %p64 = scmp.eq.s32.totalorder %s63, 0
      %s66 = sadd.s32 %s65, 1
      %s67 = scalar_select %p64, %s65, %s66
      %p70 = pneg %p64
      %p71 = scmp.eq.s32.totalorder %s17, 7
      %p72 = por %p70, %p71
      %p73 = scmp.ne.s32.totalorder %s65, %s68
      %p74 = scmp.eq.s32.totalorder %s17, 0
      %p75 = por %p73, %p74
      %p76 = scmp.ne.s32.totalorder %s65, %s68
      %p77 = scmp.eq.s32.totalorder %s22, 7
      %p78 = por %p76, %p77
      %p79 = scmp.ne.s32.totalorder %s68, %s69
      %p80 = scmp.eq.s32.totalorder %s22, 0
      %p81 = por %p79, %p80
      %p82 = scmp.ne.s32.totalorder %s68, %s69
      %p83 = scmp.eq.s32.totalorder %s23, 7
      %p84 = por %p82, %p83
      %p86 = scmp.ne.s32.totalorder %s69, %s85
      %p87 = scmp.eq.s32.totalorder %s23, 0
      %p88 = por %p86, %p87
      %s89 = ssub.s32 %s25, %s32
      %p90 = scmp.eq.s32.totalorder %s89, 0
      %s92 = sadd.s32 %s91, 1
      %s93 = scalar_select %p90, %s91, %s92
      %p96 = pneg %p90
      %p97 = scmp.eq.s32.totalorder %s17, 7
      %p98 = por %p96, %p97
      %p99 = scmp.ne.s32.totalorder %s91, %s94
      %p100 = scmp.eq.s32.totalorder %s17, 0
      %p101 = por %p99, %p100
      %p102 = scmp.ne.s32.totalorder %s91, %s94
      %p103 = scmp.eq.s32.totalorder %s22, 7
      %p104 = por %p102, %p103
      %p105 = scmp.ne.s32.totalorder %s94, %s95
      %p106 = scmp.eq.s32.totalorder %s22, 0
      %p107 = por %p105, %p106
      %p108 = scmp.ne.s32.totalorder %s94, %s95
      %p109 = scmp.eq.s32.totalorder %s23, 7
      %p110 = por %p108, %p109
      %p112 = scmp.ne.s32.totalorder %s95, %s111
      %p113 = scmp.eq.s32.totalorder %s23, 0
      %p114 = por %p112, %p113
      %s115 = ssub.s32 %s25, %s32
      %p116 = scmp.eq.s32.totalorder %s115, 0
      %s118 = sadd.s32 %s117, 1
      %s119 = scalar_select %p116, %s117, %s118
      %p122 = pneg %p116
      %p123 = scmp.eq.s32.totalorder %s17, 7
      %p124 = por %p122, %p123
      %p125 = scmp.ne.s32.totalorder %s117, %s120
      %p126 = scmp.eq.s32.totalorder %s17, 0
      %p127 = por %p125, %p126
      %p128 = scmp.ne.s32.totalorder %s117, %s120
      %p129 = scmp.eq.s32.totalorder %s22, 7
      %p130 = por %p128, %p129
      %p131 = scmp.ne.s32.totalorder %s120, %s121
      %p132 = scmp.eq.s32.totalorder %s22, 0
      %p133 = por %p131, %p132
      %p134 = scmp.ne.s32.totalorder %s120, %s121
      %p135 = scmp.eq.s32.totalorder %s23, 7
      %p136 = por %p134, %p135
      %p138 = scmp.ne.s32.totalorder %s121, %s137
      %p139 = scmp.eq.s32.totalorder %s23, 0
      %p140 = por %p138, %p139
      %s141 = ssub.s32 %s25, %s32
      %p142 = scmp.eq.s32.totalorder %s141, 0
      %s144 = sadd.s32 %s143, 1
      %s145 = scalar_select %p142, %s143, %s144
      %p148 = pneg %p142
      %p149 = scmp.eq.s32.totalorder %s17, 7
      %p150 = por %p148, %p149
      %p151 = scmp.ne.s32.totalorder %s143, %s146
      %p152 = scmp.eq.s32.totalorder %s17, 0
      %p153 = por %p151, %p152
      %p154 = scmp.ne.s32.totalorder %s143, %s146
      %p155 = scmp.eq.s32.totalorder %s22, 7
      %p156 = por %p154, %p155
      %p157 = scmp.ne.s32.totalorder %s146, %s147
      %p158 = scmp.eq.s32.totalorder %s22, 0
      %p159 = por %p157, %p158
      %p160 = scmp.ne.s32.totalorder %s146, %s147
      %p161 = scmp.eq.s32.totalorder %s23, 7
      %p162 = por %p160, %p161
      %p164 = scmp.ne.s32.totalorder %s147, %s163
      %p165 = scmp.eq.s32.totalorder %s23, 0
      %p166 = por %p164, %p165
      %s168 = sadd.s32 %s167, 1
      %p171 = scmp.eq.s32.totalorder %s17, 7
      %p172 = scmp.ne.s32.totalorder %s167, %s169
      %p173 = scmp.eq.s32.totalorder %s17, 0
      %p174 = por %p172, %p173
      %p175 = scmp.ne.s32.totalorder %s167, %s169
      %p176 = scmp.eq.s32.totalorder %s22, 7
      %p177 = por %p175, %p176
      %p178 = scmp.ne.s32.totalorder %s169, %s170
      %p179 = scmp.eq.s32.totalorder %s22, 0
      %p180 = por %p178, %p179
      %p181 = scmp.ne.s32.totalorder %s169, %s170
      %p182 = scmp.eq.s32.totalorder %s23, 7
      %p183 = por %p181, %p182
      %p185 = scmp.ne.s32.totalorder %s170, %s184
      %p186 = scmp.eq.s32.totalorder %s23, 0
      %p187 = por %p185, %p186
      %s189 = sadd.s32 %s188, 1
      %p192 = scmp.eq.s32.totalorder %s17, 7
      %p193 = scmp.ne.s32.totalorder %s188, %s190
      %p194 = scmp.eq.s32.totalorder %s17, 0
      %p195 = por %p193, %p194
      %p196 = scmp.ne.s32.totalorder %s188, %s190
      %p197 = scmp.eq.s32.totalorder %s22, 7
      %p198 = por %p196, %p197
      %p199 = scmp.ne.s32.totalorder %s190, %s191
      %p200 = scmp.eq.s32.totalorder %s22, 0
      %p201 = por %p199, %p200
      %p202 = scmp.ne.s32.totalorder %s190, %s191
      %p203 = scmp.eq.s32.totalorder %s23, 7
      %p204 = por %p202, %p203
      %p206 = scmp.ne.s32.totalorder %s191, %s205
      %p207 = scmp.eq.s32.totalorder %s23, 0
      %p208 = por %p206, %p207
      %s210 = sadd.s32 %s209, 1
      %p213 = scmp.eq.s32.totalorder %s17, 7
      %p214 = scmp.ne.s32.totalorder %s209, %s211
      %p215 = scmp.eq.s32.totalorder %s17, 0
      %p216 = por %p214, %p215
      %p217 = scmp.ne.s32.totalorder %s209, %s211
      %p218 = scmp.eq.s32.totalorder %s22, 7
      %p219 = por %p217, %p218
      %p220 = scmp.ne.s32.totalorder %s211, %s212
      %p221 = scmp.eq.s32.totalorder %s22, 0
      %p222 = por %p220, %p221
      %p223 = scmp.ne.s32.totalorder %s211, %s212
      %p224 = scmp.eq.s32.totalorder %s23, 7
      %p225 = por %p223, %p224
      %p227 = scmp.ne.s32.totalorder %s212, %s226
      %p228 = scmp.eq.s32.totalorder %s23, 0
      %p229 = por %p227, %p228
      %s230 = ssub.s32 %s24, %s36
      %p231 = scmp.eq.s32.totalorder %s230, 0
      %s233 = sadd.s32 %s232, 1
      %s234 = scalar_select %p231, %s232, %s233
      %p237 = pneg %p231
      %p238 = scmp.eq.s32.totalorder %s17, 7
      %p239 = por %p237, %p238
      %p240 = scmp.ne.s32.totalorder %s232, %s235
      %p241 = scmp.eq.s32.totalorder %s17, 0
      %p242 = por %p240, %p241
      %p243 = scmp.ne.s32.totalorder %s232, %s235
      %p244 = scmp.eq.s32.totalorder %s22, 7
      %p245 = por %p243, %p244
      %p246 = scmp.ne.s32.totalorder %s235, %s236
      %p247 = scmp.eq.s32.totalorder %s22, 0
      %p248 = por %p246, %p247
      %p249 = scmp.ne.s32.totalorder %s235, %s236
      %p250 = scmp.eq.s32.totalorder %s23, 7
      %p251 = por %p249, %p250
      %p253 = scmp.ne.s32.totalorder %s236, %s252
      %p254 = scmp.eq.s32.totalorder %s23, 0
      %p255 = por %p253, %p254
      %p256 = scmp.le.s32.totalorder 1, %s17
      %p257 = scmp.lt.s32.totalorder %s17, 9
      %p258 = pnand %p256, %p257
      %p259 = pneg %p258
      // Predicated region
      $region9: #{bert_attention.1} parent=5 // pred_check
        _
      $region10: #{bert_attention.1} parent=5 // pred_check_branch
        %261 = sbr.rel (%p258) target = $region12
      $region11: #{bert_attention.1} parent=5 // pred_region
        %s262 = ssub.s32 %s17, 1
        // Predicated region
        $region13: #{bert_attention.1} parent=11 // pred_check
          %p263 = pneg %p180
        $region14: #{bert_attention.1} parent=11 // pred_check_branch
          %265 = sbr.rel (%p263) target = $region16
        $region15: #{bert_attention.1} parent=11 // pred_region
          _
        $region16: #{bert_attention.1} parent=11 // pred_fallthru
          _
        // Predicated region
        $region17: #{bert_attention.1} parent=11 // pred_check
          %p266 = pneg %p201
        $region18: #{bert_attention.1} parent=11 // pred_check_branch
          %268 = sbr.rel (%p266) target = $region20
        $region19: #{bert_attention.1} parent=11 // pred_region
          _
        $region20: #{bert_attention.1} parent=11 // pred_fallthru
          _
        // Predicated region
        $region21: #{bert_attention.1} parent=11 // pred_check
          %p269 = pneg %p222
        $region22: #{bert_attention.1} parent=11 // pred_check_branch
          %271 = sbr.rel (%p269) target = $region24
        $region23: #{bert_attention.1} parent=11 // pred_region
          _
        $region24: #{bert_attention.1} parent=11 // pred_fallthru
          _
      $region12: #{bert_attention.1} parent=5 // pred_fallthru
        _
      %p272 = scmp.lt.s32.totalorder %s17, 8
      // Predicated region
      $region25: #{bert_attention.1} parent=5 // pred_check
        %p273 = pneg %p272
      $region26: #{bert_attention.1} parent=5 // pred_check_branch
        %275 = sbr.rel (%p273) target = $region28
      $region27: #{bert_attention.1} parent=5 // pred_region
        // Predicated region
        $region29: #{bert_attention.1} parent=27 // pred_check
          %p276 = pneg %p49
        $region30: #{bert_attention.1} parent=27 // pred_check_branch
          %278 = sbr.rel (%p276) target = $region32
        $region31: #{bert_attention.1} parent=27 // pred_region
          %p279 = scmp.lt.s32.totalorder %s24, 1
          %s280 = scalar_select %p279, %s24, 1
          %s281 = smul.addr %s280, 8
          %s282 = scalar_lea.vmem %s0, %s281
        $region32: #{bert_attention.1} parent=27 // pred_fallthru
          _
        // Predicated region
        $region33: #{bert_attention.1} parent=27 // pred_check
          %p283 = pneg %p75
        $region34: #{bert_attention.1} parent=27 // pred_check_branch
          %285 = sbr.rel (%p283) target = $region36
        $region35: #{bert_attention.1} parent=27 // pred_region
          %p286 = scmp.lt.s32.totalorder %s24, 1
          %s287 = scalar_select %p286, %s24, 1
          %s288 = scalar_lea.vmem %s1, %s287
        $region36: #{bert_attention.1} parent=27 // pred_fallthru
          _
        // Predicated region
        $region37: #{bert_attention.1} parent=27 // pred_check
          %p289 = pneg %p101
        $region38: #{bert_attention.1} parent=27 // pred_check_branch
          %291 = sbr.rel (%p289) target = $region40
        $region39: #{bert_attention.1} parent=27 // pred_region
          %p292 = scmp.lt.s32.totalorder %s25, 3
          %s293 = scalar_select %p292, %s25, 3
          %s294 = smul.addr %s293, 4
          %s295 = smul.addr %s294, 4
          %s296 = scalar_lea.vmem %s2, %s295
        $region40: #{bert_attention.1} parent=27 // pred_fallthru
          _
        // Predicated region
        $region41: #{bert_attention.1} parent=27 // pred_check
          %p297 = pneg %p127
        $region42: #{bert_attention.1} parent=27 // pred_check_branch
          %299 = sbr.rel (%p297) target = $region44
        $region43: #{bert_attention.1} parent=27 // pred_region
          %p300 = scmp.lt.s32.totalorder %s25, 3
          %s301 = scalar_select %p300, %s25, 3
          %s302 = scalar_lea.vmem %s3, %s301
        $region44: #{bert_attention.1} parent=27 // pred_fallthru
          _
        // Predicated region
        $region45: #{bert_attention.1} parent=27 // pred_check
          %p303 = pneg %p153
        $region46: #{bert_attention.1} parent=27 // pred_check_branch
          %305 = sbr.rel (%p303) target = $region48
        $region47: #{bert_attention.1} parent=27 // pred_region
          %p306 = scmp.lt.s32.totalorder %s25, 3
          %s307 = scalar_select %p306, %s25, 3
          %s308 = smul.addr %s307, 4
          %s309 = scalar_lea.vmem %s4, %s308
        $region48: #{bert_attention.1} parent=27 // pred_fallthru
          _
      $region28: #{bert_attention.1} parent=5 // pred_fallthru
        _
      %p310 = scmp.le.s32.totalorder 1, %s17
      %p311 = scmp.lt.s32.totalorder %s17, 9
      %p312 = pnand %p310, %p311
      %p313 = pneg %p312
      // Predicated region
      $region49: #{bert_attention.1} parent=5 // pred_check
        _
      $region50: #{bert_attention.1} parent=5 // pred_check_branch
        %315 = sbr.rel (%p312) target = $region52
      $region51: #{bert_attention.1} parent=5 // pred_region
        %s316 = ssub.s32 %s17, 1
        %p317 = scmp.lt.s32.totalorder %s26, 1
        %s318 = scalar_select %p317, %s26, 1
        %s319 = smul.addr %s318, 8
        %s320 = scalar_lea.vmem %s0, %s319
        %p321 = pneg %p55
        %p322 = pneg %p52
        %p323 = scmp.lt.s32.totalorder %s26, 1
        %s324 = scalar_select %p323, %s26, 1
        %s325 = scalar_lea.vmem %s1, %s324
        %p326 = pneg %p81
        %p327 = pneg %p78
        %p328 = scmp.lt.s32.totalorder %s27, 3
        %s329 = scalar_select %p328, %s27, 3
        %s330 = smul.addr %s329, 4
        %s331 = smul.addr %s330, 4
        %s332 = scalar_lea.vmem %s2, %s331
        %p333 = pneg %p107
        %p334 = pneg %p104
        %p335 = scmp.lt.s32.totalorder %s27, 3
        %s336 = scalar_select %p335, %s27, 3
        %s337 = scalar_lea.vmem %s3, %s336
        %p338 = pneg %p133
        %p339 = pneg %p130
        %p340 = scmp.lt.s32.totalorder %s27, 3
        %s341 = scalar_select %p340, %s27, 3
        %s342 = smul.addr %s341, 4
        %s343 = scalar_lea.vmem %s4, %s342
        %p344 = pneg %p159
        %p345 = pneg %p156
        %p346 = pneg %p180
        %p347 = pneg %p177
        %p348 = pneg %p201
        %p349 = pneg %p198
        %p350 = pneg %p222
        %p351 = pneg %p219
        %p352 = pneg %p248
        %p353 = pneg %p245
        %s354 = sand.u32 %s235, 1
        %s355 = scalar_lea.sflag [#allocation4], %s354
        %s356 = sand.u32 %s235, 1
        %s357 = smul.addr %s356, 8
        %s358 = scalar_lea.vmem [#allocation3], %s357
        %p359 = scmp.lt.s32.totalorder %s26, 1
        %s360 = scalar_select %p359, %s26, 1
        %s361 = smul.addr %s360, 8
        %s362 = scalar_lea.vmem %s0, %s361
        %p363 = scmp.lt.s32.totalorder %s26, 1
        %s364 = scalar_select %p363, %s26, 1
        %s365 = scalar_lea.vmem %s1, %s364
        %p366 = scmp.lt.s32.totalorder %s27, 3
        %s367 = scalar_select %p366, %s27, 3
        %s368 = smul.addr %s367, 4
        %s369 = smul.addr %s368, 4
        %s370 = scalar_lea.vmem %s2, %s369
        %p371 = scmp.lt.s32.totalorder %s27, 3
        %s372 = scalar_select %p371, %s27, 3
        %s373 = scalar_lea.vmem %s3, %s372
        %p374 = scmp.lt.s32.totalorder %s27, 3
        %s375 = scalar_select %p374, %s27, 3
        %s376 = smul.addr %s375, 4
        %s377 = scalar_lea.vmem %s4, %s376
        %v379 = vld [vmem:[%s362] sm:$0xff]
        %v380 = vpack.c.bf16 %v379, %v379
        %v381 = vld [vmem:[%s370] sm:$0xf]
        %v382 = vld [vmem:[%s370 + $0x4] sm:$0xf]
        %v383 = vld [vmem:[%s370 + $0x8] sm:$0xf]
        %v384 = vld [vmem:[%s370 + $0xc] sm:$0xf]
        %v385 = vld [vmem:[%s373] sm:$0x1]
        %v387 = vlaneseq
        %v388 = vshrl.u32 %v387, 7
        %v389 = vsub.s32 0, %v388
        %v390 = vrot.slane %v385, %v389
        %v396 = vunpack.c.l.b16 %v381
        %v397 = vunpack.c.l.b16 %v382
        %v398 = vunpack.c.l.b16 %v383
        %v399 = vunpack.c.l.b16 %v384
        %v400 = vpack.c.b16 %v397, %v396
        %v401 = vpack.c.b16 %v399, %v398
        %vm404 = vcmask 261120
        %v406 = vsel %vm404, %v380, 0
        %408 = vmatprep.subr.bf16.mxu0 0
        %409 = vmatpush1.bf16.msra.mxu0 0
        %410 = vmatprep.subr.bf16.mxu0 0
        %411 = vmatpush1.bf16.msra.mxu0 0
        %412 = vmatprep.subr.bf16.mxu0 0
        %413 = vmatpush1.bf16.msra.mxu0 0
        %414 = vmatprep.subr.bf16.mxu0 0
        %415 = vmatpush1.bf16.msra.mxu0 0
        %416 = vmatprep.subr.bf16.mxu0 0
        %417 = vmatpush1.bf16.msra.mxu0 0
        %418 = vmatprep.subr.bf16.mxu0 0
        %419 = vmatpush1.bf16.msra.mxu0 0
        %420 = vmatprep.subr.bf16.mxu0 0
        %421 = vmatpush1.bf16.msra.mxu0 %v401
        %422 = vmatprep.subr.bf16.mxu0 0
        %423 = vmatpush1.bf16.msra.mxu0 %v400
        %424 = vmatprep.subr.bf16.mxu0 0
        %425 = vmatpush2.bf16.msra.mxu0 0
        %426 = vmatprep.subr.bf16.mxu0 0
        %427 = vmatpush2.bf16.msra.mxu0 0
        %428 = vmatprep.subr.bf16.mxu0 0
        %429 = vmatpush2.bf16.msra.mxu0 0
        %430 = vmatprep.subr.bf16.mxu0 0
        %431 = vmatpush2.bf16.msra.mxu0 0
        %432 = vmatprep.subr.bf16.mxu0 0
        %433 = vmatpush2.bf16.msra.mxu0 0
        %434 = vmatprep.subr.bf16.mxu0 0
        %435 = vmatpush2.bf16.msra.mxu0 0
        %436 = vmatprep.subr.bf16.mxu0 0
        %437 = vmatpush2.bf16.msra.mxu0 0
        %438 = vmatprep.subr.bf16.mxu0 0
        %439 = vmatpush2.bf16.msra.mxu0 0
        %440 = vmatprep.mubr.bf16.mxu0 0
        %441 = vmatmul.mubr.bf16.gmra.mxu0 %v406
        %v442 = vpop.f32.mrf.mxu0
        %v443 = vadd.f32 %v390, %v442
        %v444 = vpop.f32.mrf.mxu0
        %v445 = vpop.f32.mrf.mxu0
        %v446 = vpop.f32.mrf.mxu0
        %447 = vdwg.mxu0
        %v448 = vmul.f32 %v443, 0.35355338
        %v449 = vpack.c.bf16 %v448, %v448
        %v450 = vpack.c.bf16 %v443, %v443
        %v451 = vld [vmem:[%s365] sm:$0x1]
        %v453 = vlaneseq
        %v454 = vshrl.u32 %v453, 7
        %v455 = vsub.s32 0, %v454
        %v456 = vrot.slane %v451, %v455
        %459 = vrot.lane.b32.xlu0 %v450, 120
        %v460 = vpop.permute.xlu0 %459
        %vm461 = vcmask 64512
        %v463 = vsel %vm461, %v449, 0
        %v466 = vsel %vm461, %v460, 0
        %468 = vmatprep.subr.bf16.mxu0 0
        %469 = vmatpush1.bf16.xpose.msra.mxu0 0
        %470 = vmatprep.subr.bf16.mxu0 0
        %471 = vmatpush1.bf16.xpose.msra.mxu0 0
        %472 = vmatprep.subr.bf16.mxu0 0
        %473 = vmatpush1.bf16.xpose.msra.mxu0 0
        %474 = vmatprep.subr.bf16.mxu0 0
        %475 = vmatpush1.bf16.xpose.msra.mxu0 0
        %476 = vmatprep.subr.bf16.mxu0 0
        %477 = vmatpush1.bf16.xpose.msra.mxu0 0
        %478 = vmatprep.subr.bf16.mxu0 0
        %479 = vmatpush1.bf16.xpose.msra.mxu0 0
        %480 = vmatprep.subr.bf16.mxu0 0
        %481 = vmatpush1.bf16.xpose.msra.mxu0 0
        %482 = vmatprep.subr.bf16.mxu0 0
        %483 = vmatpush1.bf16.xpose.msra.mxu0 %v466
        %484 = vmatprep.subr.bf16.mxu0 0
        %485 = vmatpush2.bf16.xpose.msra.mxu0 0
        %486 = vmatprep.subr.bf16.mxu0 0
        %487 = vmatpush2.bf16.xpose.msra.mxu0 0
        %488 = vmatprep.subr.bf16.mxu0 0
        %489 = vmatpush2.bf16.xpose.msra.mxu0 0
        %490 = vmatprep.subr.bf16.mxu0 0
        %491 = vmatpush2.bf16.xpose.msra.mxu0 0
        %492 = vmatprep.subr.bf16.mxu0 0
        %493 = vmatpush2.bf16.xpose.msra.mxu0 0
        %494 = vmatprep.subr.bf16.mxu0 0
        %495 = vmatpush2.bf16.xpose.msra.mxu0 0
        %496 = vmatprep.subr.bf16.mxu0 0
        %497 = vmatpush2.bf16.xpose.msra.mxu0 0
        %498 = vmatprep.subr.bf16.mxu0 0
        %499 = vmatpush2.bf16.xpose.msra.mxu0 0
        %500 = vmatprep.mubr.bf16.mxu0 0
        %501 = vmatmul.mubr.bf16.gmra.mxu0 %v463
        %v502 = vpop.f32.mrf.mxu0
        %v503 = vadd.f32 %v456, %v502
        %v504 = vpop.f32.mrf.mxu0
        %v505 = vpop.f32.mrf.mxu0
        %v506 = vpop.f32.mrf.mxu0
        %507 = vdwg.mxu0
        %v508 = vsel %vm461, %v503, -inf
        %509 = vmax.xlane.f32.xlu0 %v508
        %v510 = vpop.xlane.xlu0 %509
        %v511 = vsub.f32 %v503, %v510
        %v512 = vmul.f32 %v511, 1.442695
        %v513 = vpow.pop %v512
        %v514 = vsel %vm461, %v513, 0.0
        %515 = vadd.xlane.f32.xlu0 %v514
        %v516 = vpop.xlane.xlu0 %515
        %v517 = vrcp.pop %v516
        %v518 = vmul.f32 %v513, %v517
        %v519 = vpack.c.bf16 %v518, %v518
        %520 = vrot.lane.b32.xlu0 %v450, 112
        %v521 = vpop.permute.xlu0 %520
        %v523 = vsel %vm461, %v519, 0
        %vm525 = vcmask 1043456
        %v527 = vsel %vm525, %v521, 0
        %529 = vmatprep.subr.bf16.mxu0 0
        %530 = vmatpush1.bf16.msra.mxu0 0
        %531 = vmatprep.subr.bf16.mxu0 0
        %532 = vmatpush1.bf16.msra.mxu0 0
        %533 = vmatprep.subr.bf16.mxu0 0
        %534 = vmatpush1.bf16.msra.mxu0 0
        %535 = vmatprep.subr.bf16.mxu0 0
        %536 = vmatpush1.bf16.msra.mxu0 0
        %537 = vmatprep.subr.bf16.mxu0 0
        %538 = vmatpush1.bf16.msra.mxu0 0
        %539 = vmatprep.subr.bf16.mxu0 0
        %540 = vmatpush1.bf16.msra.mxu0 0
        %541 = vmatprep.subr.bf16.mxu0 0
        %542 = vmatpush1.bf16.msra.mxu0 0
        %543 = vmatprep.subr.bf16.mxu0 0
        %544 = vmatpush1.bf16.msra.mxu0 %v527
        %545 = vmatprep.subr.bf16.mxu0 0
        %546 = vmatpush2.bf16.msra.mxu0 0
        %547 = vmatprep.subr.bf16.mxu0 0
        %548 = vmatpush2.bf16.msra.mxu0 0
        %549 = vmatprep.subr.bf16.mxu0 0
        %550 = vmatpush2.bf16.msra.mxu0 0
        %551 = vmatprep.subr.bf16.mxu0 0
        %552 = vmatpush2.bf16.msra.mxu0 0
        %553 = vmatprep.subr.bf16.mxu0 0
        %554 = vmatpush2.bf16.msra.mxu0 0
        %555 = vmatprep.subr.bf16.mxu0 0
        %556 = vmatpush2.bf16.msra.mxu0 0
        %557 = vmatprep.subr.bf16.mxu0 0
        %558 = vmatpush2.bf16.msra.mxu0 0
        %559 = vmatprep.subr.bf16.mxu0 0
        %560 = vmatpush2.bf16.msra.mxu0 0
        %561 = vmatprep.mubr.bf16.mxu0 0
        %562 = vmatmul.mubr.bf16.gmra.mxu0 %v523
        %v563 = vpop.f32.mrf.mxu0
        %v564 = vadd.f32 0.0, %v563
        %v565 = vpop.f32.mrf.mxu0
        %v566 = vpop.f32.mrf.mxu0
        %v567 = vpop.f32.mrf.mxu0
        %568 = vdwg.mxu0
        %v569 = vpack.c.bf16 %v564, %v564
        %v570 = vld [vmem:[%s377] sm:$0xf]
        %v572 = vsel %vm461, %v569, 0
        %v575 = vsel %vm525, %v570, 0
        %577 = vmatprep.subr.bf16.mxu0 0
        %578 = vmatpush1.bf16.msra.mxu0 0
        %579 = vmatprep.subr.bf16.mxu0 0
        %580 = vmatpush1.bf16.msra.mxu0 0
        %581 = vmatprep.subr.bf16.mxu0 0
        %582 = vmatpush1.bf16.msra.mxu0 0
        %583 = vmatprep.subr.bf16.mxu0 0
        %584 = vmatpush1.bf16.msra.mxu0 0
        %585 = vmatprep.subr.bf16.mxu0 0
        %586 = vmatpush1.bf16.msra.mxu0 0
        %587 = vmatprep.subr.bf16.mxu0 0
        %588 = vmatpush1.bf16.msra.mxu0 0
        %589 = vmatprep.subr.bf16.mxu0 0
        %590 = vmatpush1.bf16.msra.mxu0 0
        %591 = vmatprep.subr.bf16.mxu0 0
        %592 = vmatpush1.bf16.msra.mxu0 %v575
        %593 = vmatprep.subr.bf16.mxu0 0
        %594 = vmatpush2.bf16.msra.mxu0 0
        %595 = vmatprep.subr.bf16.mxu0 0
        %596 = vmatpush2.bf16.msra.mxu0 0
        %597 = vmatprep.subr.bf16.mxu0 0
        %598 = vmatpush2.bf16.msra.mxu0 0
        %599 = vmatprep.subr.bf16.mxu0 0
        %600 = vmatpush2.bf16.msra.mxu0 0
        %601 = vmatprep.subr.bf16.mxu0 0
        %602 = vmatpush2.bf16.msra.mxu0 0
        %603 = vmatprep.subr.bf16.mxu0 0
        %604 = vmatpush2.bf16.msra.mxu0 0
        %605 = vmatprep.subr.bf16.mxu0 0
        %606 = vmatpush2.bf16.msra.mxu0 0
        %607 = vmatprep.subr.bf16.mxu0 0
        %608 = vmatpush2.bf16.msra.mxu0 0
        %609 = vmatprep.mubr.bf16.mxu0 0
        %610 = vmatmul.mubr.bf16.gmra.mxu0 %v572
        %v611 = vpop.f32.mrf.mxu0
        %v612 = vadd.f32 0.0, %v611
        %v613 = vpop.f32.mrf.mxu0
        %v614 = vpop.f32.mrf.mxu0
        %v615 = vpop.f32.mrf.mxu0
        %616 = vdwg.mxu0
        %p617 = scmp.eq.s32.totalorder %s27, 0
        // Predicated region
        $region53: #{bert_attention.1} parent=51 // pred_check
          %p618 = pneg %p617
        $region54: #{bert_attention.1} parent=51 // pred_check_branch
          %620 = sbr.rel (%p618) target = $region56
        $region55: #{bert_attention.1} parent=51 // pred_region
          %621 = vst.msk [vmem:[#allocation2] sm:$0xff] %vm404, 0.0
        $region56: #{bert_attention.1} parent=51 // pred_fallthru
          _
        %v622 = vld [vmem:[#allocation2] sm:$0xff]
        %v623 = vadd.f32 %v622, %v612
        %624 = vst.msk [vmem:[#allocation2] sm:$0xff] %vm404, %v623
        %p625 = scmp.eq.s32.totalorder %s27, 3
        // Predicated region
        $region57: #{bert_attention.1} parent=51 // pred_check
          %p626 = pneg %p625
        $region58: #{bert_attention.1} parent=51 // pred_check_branch
          %628 = sbr.rel (%p626) target = $region60
        $region59: #{bert_attention.1} parent=51 // pred_region
          %v629 = vld [vmem:[#allocation2] sm:$0xff]
          %v630 = vld [vmem:[%s5] sm:$0x1]
          %v632 = vlaneseq
          %v633 = vshrl.u32 %v632, 7
          %v634 = vsub.s32 0, %v633
          %v635 = vrot.slane %v630, %v634
          %v637 = vadd.f32 %v629, %v635
          %v638 = vadd.f32 %v637, %v379
          %v639 = vsel %vm404, %v638, 0.0
          %640 = vadd.xlane.f32.xlu0 %v639
          %v641 = vpop.xlane.xlu0 %640
          %v642 = vrcp.pop 32.0
          %v643 = vmul.f32 %v641, %v642
          %v644 = vsub.f32 %v638, %v643
          %v645 = vmul.f32 %v644, %v644
          %v646 = vsel %vm404, %v645, 0.0
          %647 = vadd.xlane.f32.xlu0 %v646
          %v648 = vpop.xlane.xlu0 %647
          %v649 = vmul.f32 %v648, %v642
          %v650 = vadd.f32 %v649, 1e-12
          %v651 = vrsqrt.pop %v650
          %v652 = vmul.f32 %v644, %v651
          %v653 = vld [vmem:[%s6] sm:$0x1]
          %v655 = vlaneseq
          %v656 = vshrl.u32 %v655, 7
          %v657 = vsub.s32 0, %v656
          %v658 = vrot.slane %v653, %v657
          %v660 = vmul.f32 %v652, %v658
          %v661 = vld [vmem:[%s7] sm:$0x1]
          %v663 = vlaneseq
          %v664 = vshrl.u32 %v663, 7
          %v665 = vsub.s32 0, %v664
          %v666 = vrot.slane %v661, %v665
          %v668 = vadd.f32 %v660, %v666
          %669 = vst.msk [vmem:[%s358] sm:$0xff] %vm404, %v668
        $region60: #{bert_attention.1} parent=51 // pred_fallthru
          _
        %s670 = sand.u32 %s235, 1
        %s671 = scalar_lea.sflag [#allocation4], %s670
        %s672 = sand.u32 %s235, 1
        %s673 = smul.addr %s672, 8
        %s674 = scalar_lea.vmem [#allocation3], %s673
        // Predicated region
        $region61: #{bert_attention.1} parent=51 // pred_check
          %p675 = pneg %p245
        $region62: #{bert_attention.1} parent=51 // pred_check_branch
          %677 = sbr.rel (%p675) target = $region64
        $region63: #{bert_attention.1} parent=51 // pred_region
          %s679 = ssub.s32 128, 128
          %680 = vsyncadd %s671, %s679
          %s681 = smul.addr %s26, 128
          %s682 = scalar_lea.hbm %s8, %s681
          %s684 = sshll.u32 %s674, 4
          %s685 = int_to_ptr.vmem [resolvable:$true] %s684
          %687 = dma.vmem_to_hbm [thread:$0]  %s685, 128, %s682, %s671
        $region64: #{bert_attention.1} parent=51 // pred_fallthru
          _
      $region52: #{bert_attention.1} parent=5 // pred_fallthru
        _
      %p688 = scmp.le.s32.totalorder 2, %s17
      // Predicated region
      $region65: #{bert_attention.1} parent=5 // pred_check
        %p689 = pneg %p688
      $region66: #{bert_attention.1} parent=5 // pred_check_branch
        %691 = sbr.rel (%p689) target = $region68
      $region67: #{bert_attention.1} parent=5 // pred_region
        %s692 = ssub.s32 %s17, 2
        // Predicated region
        $region69: #{bert_attention.1} parent=67 // pred_check
          %p693 = pneg %p251
        $region70: #{bert_attention.1} parent=67 // pred_check_branch
          %695 = sbr.rel (%p693) target = $region72
        $region71: #{bert_attention.1} parent=67 // pred_region
          %s696 = sand.u32 %s236, 1
          %s697 = scalar_lea.sflag [#allocation4], %s696
          %s698 = sand.u32 %s236, 1
          %s699 = smul.addr %s698, 8
          %s700 = scalar_lea.vmem [#allocation3], %s699
          %701 = dma.done %s697, 128
        $region72: #{bert_attention.1} parent=67 // pred_fallthru
          _
      $region68: #{bert_attention.1} parent=5 // pred_fallthru
        _
    $region6: #{bert_attention.1} parent=1 // loop_footer
      %s21 = sadd.s32 1, %s17
    $region7: #{bert_attention.1} parent=1 // loop_footer_branch
      %16 = sbr.rel target = $region3
    $region8: #{bert_attention.1} parent=1 // loop_exit
      _
    %702 = vsyncpa [#allocation4], 1
    %s703 = scalar_lea.sflag [#allocation4], 1
    %704 = vsyncpa %s703, 1

</llo_original>
